<compile_context>
chip_gen: v6e
topology: v6e:2x2x1
jax: 0.10.0
libtpu: 0.0.40
codegen_flags: <defaults>
</compile_context>

<pallas_src>
import functools

import jax
import jax.numpy as jnp
from jax.experimental import pallas as pl
from jax.experimental.pallas import tpu as pltpu


def _round_up(x: int, m: int) -> int:
    return (x + m - 1) // m * m


# ----------------------------------------------------------------------------
# Pallas kernel: fused 3-layer MLP forward on one batch tile (all f32)
#   h1  = relu(x @ W1 + b1)    (F  -> 40)
#   h2  = relu(h1 @ W2 + b2)   (40 -> 60)
#   out = h2 @ W3 + b3         (60 -> C)
# ----------------------------------------------------------------------------
def _mlp_kernel(x_ref, w1_ref, b1_ref, w2_ref, b2_ref, w3_ref, b3_ref, o_ref):
    x = x_ref[...]  # f32 (tile_n, F)

    h1 = jnp.dot(x, w1_ref[...], preferred_element_type=jnp.float32)
    h1 = jnp.maximum(h1 + b1_ref[...], 0.0)

    h2 = jnp.dot(h1, w2_ref[...], preferred_element_type=jnp.float32)
    h2 = jnp.maximum(h2 + b2_ref[...], 0.0)

    out = jnp.dot(h2, w3_ref[...], preferred_element_type=jnp.float32)
    o_ref[...] = (out + b3_ref[...]).astype(o_ref.dtype)


def _padded_tile_bytes(rows: int, cols: int, itemsize: int) -> int:
    # Conservative VMEM footprint of a (rows, cols) tile: sublane pad to 8,
    # lane pad to 128.
    return _round_up(rows, 8) * _round_up(cols, 128) * itemsize


@functools.partial(jax.jit, static_argnames=("batch_tile",))
def neuralnet_forward(x, params, *, batch_tile: int = 2048):
    """Fused forward pass of `NeuralNet` as a single Pallas TPU kernel.

    x:      (N, nr_features) float32
    params: dict with w1 (F,40), b1 (1,40), w2 (40,60), b2 (1,60),
            w3 (60,C), b3 (1,C)  -- weights pre-transposed to (in, out), f32.
    """
    n, f = x.shape
    w1, b1 = params["w1"], params["b1"]
    w2, b2 = params["w2"], params["b2"]
    w3, b3 = params["w3"], params["b3"]
    h1, h2, c = w1.shape[1], w2.shape[1], w3.shape[1]

    # --- batch tile selection ------------------------------------------------
    # Small N: one tile (fewest grid steps; the ~0.35 us/step overhead is the
    # dominant cost on single-TC v5e/v6e).  Large N: balanced tiles of at most
    # `batch_tile` rows, which naturally yields >=2 grid steps so the
    # "parallel" batch axis can be sharded across v7x's two TensorCores.
    bt_cap = max(8, min(batch_tile, 8192))
    if n <= bt_cap:
        bt = _round_up(max(n, 1), 8)
    else:
        n_tiles = pl.cdiv(n, bt_cap)
        bt = _round_up(pl.cdiv(n, n_tiles), 8)
    grid = (pl.cdiv(n, bt),)   # ragged N: partial last block, no jnp.pad

    # --- VMEM budget (all f32): double-buffered x/out tiles + temps + weights
    est = (
        2 * _padded_tile_bytes(bt, f, 4)        # x tile, double-buffered
        + 2 * _padded_tile_bytes(bt, c, 4)      # out tile, double-buffered
        + _padded_tile_bytes(bt, h1, 4)         # h1 temporary
        + _padded_tile_bytes(bt, h2, 4)         # h2 temporary
        + _padded_tile_bytes(f, h1, 4) + _padded_tile_bytes(h1, h2, 4)
        + _padded_tile_bytes(h2, c, 4)          # weights
        + 3 * _padded_tile_bytes(1, 128, 4)     # biases
    )
    # Cap at 48 MiB so there is headroom under v7x's 64 MiB/TC physical VMEM.
    vmem_limit = min(max(_round_up(est + (8 << 20), 1 << 20), 32 << 20), 48 << 20)

    # Batch axis is tiled & pipelined; weights/biases are fully resident
    # (block == full array for every non-batch dim, so the (8,128) divisibility
    # rule is satisfied even though 30/40/60/C are not multiples of 128).
    in_specs = [
        pl.BlockSpec((bt, f), lambda i: (i, 0)),    # x
        pl.BlockSpec((f, h1), lambda i: (0, 0)),    # w1
        pl.BlockSpec((1, h1), lambda i: (0, 0)),    # b1
        pl.BlockSpec((h1, h2), lambda i: (0, 0)),   # w2
        pl.BlockSpec((1, h2), lambda i: (0, 0)),    # b2
        pl.BlockSpec((h2, c), lambda i: (0, 0)),    # w3
        pl.BlockSpec((1, c), lambda i: (0, 0)),     # b3
    ]
    out_specs = pl.BlockSpec((bt, c), lambda i: (i, 0))

    out = pl.pallas_call(
        _mlp_kernel,
        out_shape=jax.ShapeDtypeStruct((n, c), jnp.float32),
        grid_spec=pltpu.PrefetchScalarGridSpec(
            num_scalar_prefetch=0,
            grid=grid,
            in_specs=in_specs,
            out_specs=out_specs,
        ),
        compiler_params=pltpu.CompilerParams(
            dimension_semantics=("parallel",),   # batch rows are independent
            vmem_limit_bytes=vmem_limit,
        ),
    )(x, w1, b1, w2, b2, w3, b3)

    return out


# ----------------------------------------------------------------------------
# Deterministic parameter init (kaiming_uniform, fan_out, relu gain),
# mirroring NeuralNet layer shapes: Linear(F->40), Linear(40->60),
# Linear(60->C).  Weights stored transposed (in, out), f32.
# NOTE: PyTorch's default nn.Linear bias init differs (uniform +-1/sqrt(fan_in));
# this only affects parameter parity, not the forward-pass kernel.
# ----------------------------------------------------------------------------
def init_params(key, nr_features, nr_classes):
    dims = [(nr_features, 40), (40, 60), (60, nr_classes)]
    params = {}
    gain = jnp.sqrt(2.0)  # relu gain
    for idx, (fan_in, fan_out) in enumerate(dims, start=1):
        key, kw, kb = jax.random.split(key, 3)
        bound = gain * jnp.sqrt(3.0 / fan_out)  # kaiming_uniform, mode='fan_out'
        w = jax.random.uniform(
            kw, (fan_in, fan_out), jnp.float32, minval=-bound, maxval=bound
        )
        b = jax.random.uniform(
            kb, (1, fan_out), jnp.float32, minval=-bound, maxval=bound
        )
        params[f"w{idx}"] = w
        params[f"b{idx}"] = b
    return params


def reference_forward(x, params):
    h1 = jnp.maximum(x @ params["w1"] + params["b1"], 0.0)
    h2 = jnp.maximum(h1 @ params["w2"] + params["b2"], 0.0)
    return h2 @ params["w3"] + params["b3"]


# TODO(synk): training loop / Adam / accuracy / predict / dataloader plumbing
# in the PyTorch class are host-side orchestration, not forward-pass ops, and
# are intentionally not translated to Pallas.

if __name__ == "__main__":
    nr_features = 30
    nr_classes = 3

    key = jax.random.PRNGKey(0)
    key, kx1, kx2 = jax.random.split(key, 3)
    params = init_params(key, nr_features, nr_classes)

    # Small case: single tile, grid=(1,).
    x_small = jax.random.normal(kx1, (8, nr_features), jnp.float32)
    out_small = jax.block_until_ready(neuralnet_forward(x_small, params))
    ref_small = reference_forward(x_small, params)
    assert out_small.shape == (8, nr_classes)
    assert jnp.allclose(out_small, ref_small, atol=1e-3, rtol=1e-3), \
        "small-batch mismatch vs f32 reference"

    # Ragged, multi-tile case: exercises the cdiv grid with a partial last
    # block (1000 rows, tile=256 -> grid=(4,), last block 232 rows) and the
    # parallel batch axis.
    x_big = jax.random.normal(kx2, (1000, nr_features), jnp.float32)
    out_big = jax.block_until_ready(
        neuralnet_forward(x_big, params, batch_tile=256)
    )
    ref_big = reference_forward(x_big, params)
    assert out_big.shape == (1000, nr_classes)
    assert jnp.allclose(out_big, ref_big, atol=1e-3, rtol=1e-3), \
        "large-batch mismatch vs f32 reference"

    print("KERNEL_OK")
</pallas_src>

<mosaic_0001>
module attributes {stable_mosaic.version = 11 : i64} {
  func.func @_mlp_kernel(%arg0: i32, %arg1: memref<8x30xf32, #tpu.memory_space<vmem>>, %arg2: memref<30x40xf32, #tpu.memory_space<vmem>>, %arg3: memref<1x40xf32, #tpu.memory_space<vmem>>, %arg4: memref<40x60xf32, #tpu.memory_space<vmem>>, %arg5: memref<1x60xf32, #tpu.memory_space<vmem>>, %arg6: memref<60x3xf32, #tpu.memory_space<vmem>>, %arg7: memref<1x3xf32, #tpu.memory_space<vmem>>, %arg8: memref<8x3xf32, #tpu.memory_space<vmem>>) attributes {dimension_semantics = [#tpu.dimension_semantics<parallel>], iteration_bounds = array<i64: 1>, scalar_prefetch = 0 : i64, scratch_operands = 0 : i64, tpu.core_type = #tpu.core_type<tc>, window_params = [{transform_indices = @transform_0, window_bounds = array<i64: 8, 30>}, {pipeline_mode = #tpu.pipeline_mode<synchronous>, transform_indices = @transform_1, window_bounds = array<i64: 30, 40>}, {pipeline_mode = #tpu.pipeline_mode<synchronous>, transform_indices = @transform_2, window_bounds = array<i64: 1, 40>}, {pipeline_mode = #tpu.pipeline_mode<synchronous>, transform_indices = @transform_3, window_bounds = array<i64: 40, 60>}, {pipeline_mode = #tpu.pipeline_mode<synchronous>, transform_indices = @transform_4, window_bounds = array<i64: 1, 60>}, {pipeline_mode = #tpu.pipeline_mode<synchronous>, transform_indices = @transform_5, window_bounds = array<i64: 60, 3>}, {pipeline_mode = #tpu.pipeline_mode<synchronous>, transform_indices = @transform_6, window_bounds = array<i64: 1, 3>}, {transform_indices = @transform_7, window_bounds = array<i64: 8, 3>}]} {
    %c0 = arith.constant 0 : index
    %c0_0 = arith.constant 0 : index
    %0 = vector.load %arg1[%c0, %c0_0] : memref<8x30xf32, #tpu.memory_space<vmem>>, vector<8x30xf32>
    %c0_1 = arith.constant 0 : index
    %c0_2 = arith.constant 0 : index
    %1 = vector.load %arg2[%c0_1, %c0_2] : memref<30x40xf32, #tpu.memory_space<vmem>>, vector<30x40xf32>
    %cst = arith.constant dense<0.000000e+00> : vector<8x40xf32>
    %2 = tpu.matmul %0, %1, %cst {dimension_numbers = #tpu.dot_dimension_numbers<[1], [0], [0], [1], [0, 0, 1, 1], [], []>} : vector<8x30xf32>, vector<30x40xf32>, vector<8x40xf32> -> vector<8x40xf32>
    %c0_3 = arith.constant 0 : index
    %c0_4 = arith.constant 0 : index
    %3 = vector.load %arg3[%c0_3, %c0_4] : memref<1x40xf32, #tpu.memory_space<vmem>>, vector<1x40xf32>
    %4 = vector.broadcast %3 : vector<1x40xf32> to vector<8x40xf32>
    %5 = arith.addf %2, %4 : vector<8x40xf32>
    %cst_5 = arith.constant 0.000000e+00 : f32
    %6 = vector.broadcast %cst_5 : f32 to vector<8x40xf32>
    %7 = arith.maximumf %5, %6 : vector<8x40xf32>
    %c0_6 = arith.constant 0 : index
    %c0_7 = arith.constant 0 : index
    %8 = vector.load %arg4[%c0_6, %c0_7] : memref<40x60xf32, #tpu.memory_space<vmem>>, vector<40x60xf32>
    %cst_8 = arith.constant dense<0.000000e+00> : vector<8x60xf32>
    %9 = tpu.matmul %7, %8, %cst_8 {dimension_numbers = #tpu.dot_dimension_numbers<[1], [0], [0], [1], [0, 0, 1, 1], [], []>} : vector<8x40xf32>, vector<40x60xf32>, vector<8x60xf32> -> vector<8x60xf32>
    %c0_9 = arith.constant 0 : index
    %c0_10 = arith.constant 0 : index
    %10 = vector.load %arg5[%c0_9, %c0_10] : memref<1x60xf32, #tpu.memory_space<vmem>>, vector<1x60xf32>
    %11 = vector.broadcast %10 : vector<1x60xf32> to vector<8x60xf32>
    %12 = arith.addf %9, %11 : vector<8x60xf32>
    %cst_11 = arith.constant 0.000000e+00 : f32
    %13 = vector.broadcast %cst_11 : f32 to vector<8x60xf32>
    %14 = arith.maximumf %12, %13 : vector<8x60xf32>
    %c0_12 = arith.constant 0 : index
    %c0_13 = arith.constant 0 : index
    %15 = vector.load %arg6[%c0_12, %c0_13] : memref<60x3xf32, #tpu.memory_space<vmem>>, vector<60x3xf32>
    %cst_14 = arith.constant dense<0.000000e+00> : vector<8x3xf32>
    %16 = tpu.matmul %14, %15, %cst_14 {dimension_numbers = #tpu.dot_dimension_numbers<[1], [0], [0], [1], [0, 0, 1, 1], [], []>} : vector<8x60xf32>, vector<60x3xf32>, vector<8x3xf32> -> vector<8x3xf32>
    %c0_15 = arith.constant 0 : index
    %c0_16 = arith.constant 0 : index
    %17 = vector.load %arg7[%c0_15, %c0_16] : memref<1x3xf32, #tpu.memory_space<vmem>>, vector<1x3xf32>
    %18 = vector.broadcast %17 : vector<1x3xf32> to vector<8x3xf32>
    %19 = arith.addf %16, %18 : vector<8x3xf32>
    %c0_17 = arith.constant 0 : index
    %c0_18 = arith.constant 0 : index
    %20 = vector.load %arg8[%c0_17, %c0_18] : memref<8x3xf32, #tpu.memory_space<vmem>>, vector<8x3xf32>
    tpu.vector_store %arg8[%c0_17, %c0_18], %19 {strides = array<i32>} : memref<8x3xf32, #tpu.memory_space<vmem>>, vector<8x3xf32>,
    return
  }
  func.func @transform_0(%arg0: i32) -> (i32, i32) {
    %c0_i32 = arith.constant 0 : i32
    %c0_i32_0 = arith.constant 0 : i32
    return %arg0, %c0_i32 : i32, i32
  }
  func.func @transform_1(%arg0: i32) -> (i32, i32) {
    %c0_i32 = arith.constant 0 : i32
    %c0_i32_0 = arith.constant 0 : i32
    %c0_i32_1 = arith.constant 0 : i32
    return %c0_i32, %c0_i32_0 : i32, i32
  }
  func.func @transform_2(%arg0: i32) -> (i32, i32) {
    %c0_i32 = arith.constant 0 : i32
    %c0_i32_0 = arith.constant 0 : i32
    %c0_i32_1 = arith.constant 0 : i32
    return %c0_i32, %c0_i32_0 : i32, i32
  }
  func.func @transform_3(%arg0: i32) -> (i32, i32) {
    %c0_i32 = arith.constant 0 : i32
    %c0_i32_0 = arith.constant 0 : i32
    %c0_i32_1 = arith.constant 0 : i32
    return %c0_i32, %c0_i32_0 : i32, i32
  }
  func.func @transform_4(%arg0: i32) -> (i32, i32) {
    %c0_i32 = arith.constant 0 : i32
    %c0_i32_0 = arith.constant 0 : i32
    %c0_i32_1 = arith.constant 0 : i32
    return %c0_i32, %c0_i32_0 : i32, i32
  }
  func.func @transform_5(%arg0: i32) -> (i32, i32) {
    %c0_i32 = arith.constant 0 : i32
    %c0_i32_0 = arith.constant 0 : i32
    %c0_i32_1 = arith.constant 0 : i32
    return %c0_i32, %c0_i32_0 : i32, i32
  }
  func.func @transform_6(%arg0: i32) -> (i32, i32) {
    %c0_i32 = arith.constant 0 : i32
    %c0_i32_0 = arith.constant 0 : i32
    %c0_i32_1 = arith.constant 0 : i32
    return %c0_i32, %c0_i32_0 : i32, i32
  }
  func.func @transform_7(%arg0: i32) -> (i32, i32) {
    %c0_i32 = arith.constant 0 : i32
    %c0_i32_0 = arith.constant 0 : i32
    return %arg0, %c0_i32 : i32, i32
  }
}

</mosaic_0001>

<llo_original>
// kernel: neuralnet_forward.1
$region0: #{neuralnet_forward.1}
  #allocation0 [shape = 'u32[]', space=smem, size = 0x4, offset = 0x4, fixed_abs, tag = 'smem constant byte address 0x4 - core index']
  #allocation1 [shape = 'u32[144,128]{1,0:T(1,128)}', space=vmem, size = 0x12000, scoped, tag = 'internal scratch']
  %s0 = inlined_call_operand.hbm [shape: f32[8,30], index: 0, kind: input, shape index: {}]
  %s1 = inlined_call_operand.vmem [shape: f32[30,40], index: 1, kind: input, shape index: {}]
  %s2 = inlined_call_operand.vmem [shape: f32[1,40], index: 2, kind: input, shape index: {}]
  %s3 = inlined_call_operand.vmem [shape: f32[40,60], index: 3, kind: input, shape index: {}]
  %s4 = inlined_call_operand.vmem [shape: f32[1,60], index: 4, kind: input, shape index: {}]
  %s5 = inlined_call_operand.vmem [shape: f32[60,3], index: 5, kind: input, shape index: {}]
  %s6 = inlined_call_operand.hbm [shape: f32[1,3], index: 6, kind: input, shape index: {}]
  %s7 = inlined_call_operand.vmem [shape: f32[8,3], index: 7, kind: output, shape index: {}]
  %s8 = sld [smem:[#allocation0]]
  $region46: #{neuralnet_forward.1} parent=0
    _
  %s10 = ssub.s32 1, %s8
  %s11 = scalar_select 0, %s10, %s8
  $region1: #{neuralnet_forward.1} parent=0
    #allocation2 [shape = 'u8[4096]{0}', space=vmem, size = 0x1000, scoped, tag = 'input window, operand 0, single buffered']
    #allocation3 [shape = 's32[1]{0}', space=sflag, size = 0x4, scoped, tag = 'scoped memory for neuralnet_forward.1']
    #allocation4 [shape = 'u8[512]{0}', space=vmem, size = 0x400, scoped, tag = 'input window, operand 6, single buffered']
    #allocation5 [shape = 's32[1]{0}', space=sflag, size = 0x4, scoped, tag = 'scoped memory for neuralnet_forward.1']
    %12 = vsyncpa [#allocation3], 0
    %13 = vsyncpa [#allocation5], 0
    // Predicated region
    $region2: #{neuralnet_forward.1} parent=1 // pred_check
      _
    $region3: #{neuralnet_forward.1} parent=1 // pred_check_branch
      %15 = sbr.rel (0) target = $region5
    $region4: #{neuralnet_forward.1} parent=1 // pred_region
      %s17 = ssub.s32 128, 128
      %18 = vsyncadd [#allocation3], %s17
      %s20 = sshll.u32 [#allocation2], 4
      %s21 = int_to_ptr.vmem [resolvable:$true] %s20
      %23 = dma.hbm_to_vmem [thread:$0]  %s0, 128, %s21, [#allocation3]
    $region5: #{neuralnet_forward.1} parent=1 // pred_fallthru
      _
    // Predicated region
    $region6: #{neuralnet_forward.1} parent=1 // pred_check
      _
    $region7: #{neuralnet_forward.1} parent=1 // pred_check_branch
      %25 = sbr.rel (0) target = $region9
    $region8: #{neuralnet_forward.1} parent=1 // pred_region
      _
    $region9: #{neuralnet_forward.1} parent=1 // pred_fallthru
      _
    // Predicated region
    $region10: #{neuralnet_forward.1} parent=1 // pred_check
      _
    $region11: #{neuralnet_forward.1} parent=1 // pred_check_branch
      %27 = sbr.rel (0) target = $region13
    $region12: #{neuralnet_forward.1} parent=1 // pred_region
      _
    $region13: #{neuralnet_forward.1} parent=1 // pred_fallthru
      _
    // Predicated region
    $region14: #{neuralnet_forward.1} parent=1 // pred_check
      _
    $region15: #{neuralnet_forward.1} parent=1 // pred_check_branch
      %29 = sbr.rel (0) target = $region17
    $region16: #{neuralnet_forward.1} parent=1 // pred_region
      _
    $region17: #{neuralnet_forward.1} parent=1 // pred_fallthru
      _
    // Predicated region
    $region18: #{neuralnet_forward.1} parent=1 // pred_check
      _
    $region19: #{neuralnet_forward.1} parent=1 // pred_check_branch
      %31 = sbr.rel (0) target = $region21
    $region20: #{neuralnet_forward.1} parent=1 // pred_region
      _
    $region21: #{neuralnet_forward.1} parent=1 // pred_fallthru
      _
    // Predicated region
    $region22: #{neuralnet_forward.1} parent=1 // pred_check
      _
    $region23: #{neuralnet_forward.1} parent=1 // pred_check_branch
      %33 = sbr.rel (0) target = $region25
    $region24: #{neuralnet_forward.1} parent=1 // pred_region
      _
    $region25: #{neuralnet_forward.1} parent=1 // pred_fallthru
      _
    // Predicated region
    $region26: #{neuralnet_forward.1} parent=1 // pred_check
      _
    $region27: #{neuralnet_forward.1} parent=1 // pred_check_branch
      %35 = sbr.rel (0) target = $region29
    $region28: #{neuralnet_forward.1} parent=1 // pred_region
      %s37 = ssub.s32 16, 16
      %38 = vsyncadd [#allocation5], %s37
      %s40 = sshll.u32 [#allocation4], 4
      %s41 = int_to_ptr.vmem [resolvable:$true] %s40
      %43 = dma.hbm_to_vmem [thread:$0]  %s6, 16, %s41, [#allocation5]
    $region29: #{neuralnet_forward.1} parent=1 // pred_fallthru
      _
    // Predicated region
    $region30: #{neuralnet_forward.1} parent=1 // pred_check
      _
    $region31: #{neuralnet_forward.1} parent=1 // pred_check_branch
      %45 = sbr.rel (0) target = $region33
    $region32: #{neuralnet_forward.1} parent=1 // pred_region
      %46 = dma.done [#allocation3], 128
    $region33: #{neuralnet_forward.1} parent=1 // pred_fallthru
      _
    // Predicated region
    $region34: #{neuralnet_forward.1} parent=1 // pred_check
      _
    $region35: #{neuralnet_forward.1} parent=1 // pred_check_branch
      %48 = sbr.rel (0) target = $region37
    $region36: #{neuralnet_forward.1} parent=1 // pred_region
      %49 = dma.done [#allocation5], 16
    $region37: #{neuralnet_forward.1} parent=1 // pred_fallthru
      _
    %v50 = vld [vmem:[#allocation2] sm:$0xff]
    %v51 = vld [vmem:[%s1] sm:$0xff]
    %v52 = vld [vmem:[%s1 + $0x8] sm:$0xff]
    %v53 = vld [vmem:[%s1 + $0x10] sm:$0xff]
    %v54 = vld [vmem:[%s1 + $0x18] sm:$0x3f]
    %v55 = vld [vmem:[%s2] sm:$0x1]
    %v57 = vlaneseq
    %v58 = vshrl.u32 %v57, 7
    %v59 = vsub.s32 0, %v58
    %v60 = vrot.slane %v55, %v59
    %vm62 = vcmask 244736
    %v64 = vsel %vm62, %v50, 0
    %vm66 = vcmask 1045504
    %v68 = vsel %vm66, %v54, 0
    %70 = vmatprep.subr.mxu0 0.0
    %71 = vmatpush1.msra.mxu0 0.0
    %72 = vmatprep.subr.mxu0 0.0
    %73 = vmatpush1.msra.mxu0 0.0
    %74 = vmatprep.subr.mxu0 0.0
    %75 = vmatpush1.msra.mxu0 0.0
    %76 = vmatprep.subr.mxu0 0.0
    %77 = vmatpush1.msra.mxu0 0.0
    %78 = vmatprep.subr.mxu0 0.0
    %79 = vmatpush1.msra.mxu0 0.0
    %80 = vmatprep.subr.mxu0 0.0
    %81 = vmatpush1.msra.mxu0 0.0
    %82 = vmatprep.subr.mxu0 0.0
    %83 = vmatpush1.msra.mxu0 0.0
    %84 = vmatprep.subr.mxu0 0.0
    %85 = vmatpush1.msra.mxu0 0.0
    %86 = vmatprep.subr.mxu0 0.0
    %87 = vmatpush1.msra.mxu0 0.0
    %88 = vmatprep.subr.mxu0 0.0
    %89 = vmatpush1.msra.mxu0 0.0
    %90 = vmatprep.subr.mxu0 0.0
    %91 = vmatpush1.msra.mxu0 0.0
    %92 = vmatprep.subr.mxu0 0.0
    %93 = vmatpush1.msra.mxu0 0.0
    %94 = vmatprep.subr.mxu0 0.0
    %95 = vmatpush1.msra.mxu0 %v68
    %96 = vmatprep.subr.mxu0 0.0
    %97 = vmatpush1.msra.mxu0 %v53
    %98 = vmatprep.subr.mxu0 0.0
    %99 = vmatpush1.msra.mxu0 %v52
    %100 = vmatprep.subr.mxu0 0.0
    %101 = vmatpush1.msra.mxu0 %v51
    %102 = vmatprep.subr.mxu0 0.0
    %103 = vmatpush2.msra.mxu0 0.0
    %104 = vmatprep.subr.mxu0 0.0
    %105 = vmatpush2.msra.mxu0 0.0
    %106 = vmatprep.subr.mxu0 0.0
    %107 = vmatpush2.msra.mxu0 0.0
    %108 = vmatprep.subr.mxu0 0.0
    %109 = vmatpush2.msra.mxu0 0.0
    %110 = vmatprep.subr.mxu0 0.0
    %111 = vmatpush2.msra.mxu0 0.0
    %112 = vmatprep.subr.mxu0 0.0
    %113 = vmatpush2.msra.mxu0 0.0
    %114 = vmatprep.subr.mxu0 0.0
    %115 = vmatpush2.msra.mxu0 0.0
    %116 = vmatprep.subr.mxu0 0.0
    %117 = vmatpush2.msra.mxu0 0.0
    %118 = vmatprep.subr.mxu0 0.0
    %119 = vmatpush2.msra.mxu0 0.0
    %120 = vmatprep.subr.mxu0 0.0
    %121 = vmatpush2.msra.mxu0 0.0
    %122 = vmatprep.subr.mxu0 0.0
    %123 = vmatpush2.msra.mxu0 0.0
    %124 = vmatprep.subr.mxu0 0.0
    %125 = vmatpush2.msra.mxu0 0.0
    %126 = vmatprep.subr.mxu0 0.0
    %127 = vmatpush2.msra.mxu0 0.0
    %128 = vmatprep.subr.mxu0 0.0
    %129 = vmatpush2.msra.mxu0 0.0
    %130 = vmatprep.subr.mxu0 0.0
    %131 = vmatpush2.msra.mxu0 0.0
    %132 = vmatprep.subr.mxu0 0.0
    %133 = vmatpush2.msra.mxu0 0.0
    %134 = vmatprep.mubr.f32.mxu0 0.0
    %135 = vmatmul.mubr.f32.gmra.mxu0 %v64
    %v136 = vpop.f32.mrf.mxu0
    %v137 = vadd.f32 %v60, %v136
    %v138 = vpop.f32.mrf.mxu0
    %139 = vdwg.mxu0
    %v140 = vmax.f32 %v137, 0.0
    %v141 = vld [vmem:[%s3] sm:$0xff]
    %v142 = vld [vmem:[%s3 + $0x8] sm:$0xff]
    %v143 = vld [vmem:[%s3 + $0x10] sm:$0xff]
    %v144 = vld [vmem:[%s3 + $0x18] sm:$0xff]
    %v145 = vld [vmem:[%s3 + $0x20] sm:$0xff]
    %v146 = vld [vmem:[%s4] sm:$0x1]
    %v148 = vlaneseq
    %v149 = vshrl.u32 %v148, 7
    %v150 = vsub.s32 0, %v149
    %v151 = vrot.slane %v146, %v150
    %vm153 = vcmask 326656
    %v155 = vsel %vm153, %v140, 0
    %157 = vmatprep.subr.mxu0 0.0
    %158 = vmatpush1.msra.mxu0 0.0
    %159 = vmatprep.subr.mxu0 0.0
    %160 = vmatpush1.msra.mxu0 0.0
    %161 = vmatprep.subr.mxu0 0.0
    %162 = vmatpush1.msra.mxu0 0.0
    %163 = vmatprep.subr.mxu0 0.0
    %164 = vmatpush1.msra.mxu0 0.0
    %165 = vmatprep.subr.mxu0 0.0
    %166 = vmatpush1.msra.mxu0 0.0
    %167 = vmatprep.subr.mxu0 0.0
    %168 = vmatpush1.msra.mxu0 0.0
    %169 = vmatprep.subr.mxu0 0.0
    %170 = vmatpush1.msra.mxu0 0.0
    %171 = vmatprep.subr.mxu0 0.0
    %172 = vmatpush1.msra.mxu0 0.0
    %173 = vmatprep.subr.mxu0 0.0
    %174 = vmatpush1.msra.mxu0 0.0
    %175 = vmatprep.subr.mxu0 0.0
    %176 = vmatpush1.msra.mxu0 0.0
    %177 = vmatprep.subr.mxu0 0.0
    %178 = vmatpush1.msra.mxu0 0.0
    %179 = vmatprep.subr.mxu0 0.0
    %180 = vmatpush1.msra.mxu0 %v145
    %181 = vmatprep.subr.mxu0 0.0
    %182 = vmatpush1.msra.mxu0 %v144
    %183 = vmatprep.subr.mxu0 0.0
    %184 = vmatpush1.msra.mxu0 %v143
    %185 = vmatprep.subr.mxu0 0.0
    %186 = vmatpush1.msra.mxu0 %v142
    %187 = vmatprep.subr.mxu0 0.0
    %188 = vmatpush1.msra.mxu0 %v141
    %189 = vmatprep.subr.mxu0 0.0
    %190 = vmatpush2.msra.mxu0 0.0
    %191 = vmatprep.subr.mxu0 0.0
    %192 = vmatpush2.msra.mxu0 0.0
    %193 = vmatprep.subr.mxu0 0.0
    %194 = vmatpush2.msra.mxu0 0.0
    %195 = vmatprep.subr.mxu0 0.0
    %196 = vmatpush2.msra.mxu0 0.0
    %197 = vmatprep.subr.mxu0 0.0
    %198 = vmatpush2.msra.mxu0 0.0
    %199 = vmatprep.subr.mxu0 0.0
    %200 = vmatpush2.msra.mxu0 0.0
    %201 = vmatprep.subr.mxu0 0.0
    %202 = vmatpush2.msra.mxu0 0.0
    %203 = vmatprep.subr.mxu0 0.0
    %204 = vmatpush2.msra.mxu0 0.0
    %205 = vmatprep.subr.mxu0 0.0
    %206 = vmatpush2.msra.mxu0 0.0
    %207 = vmatprep.subr.mxu0 0.0
    %208 = vmatpush2.msra.mxu0 0.0
    %209 = vmatprep.subr.mxu0 0.0
    %210 = vmatpush2.msra.mxu0 0.0
    %211 = vmatprep.subr.mxu0 0.0
    %212 = vmatpush2.msra.mxu0 0.0
    %213 = vmatprep.subr.mxu0 0.0
    %214 = vmatpush2.msra.mxu0 0.0
    %215 = vmatprep.subr.mxu0 0.0
    %216 = vmatpush2.msra.mxu0 0.0
    %217 = vmatprep.subr.mxu0 0.0
    %218 = vmatpush2.msra.mxu0 0.0
    %219 = vmatprep.subr.mxu0 0.0
    %220 = vmatpush2.msra.mxu0 0.0
    %221 = vmatprep.mubr.f32.mxu0 0.0
    %222 = vmatmul.mubr.f32.gmra.mxu0 %v155
    %v223 = vpop.f32.mrf.mxu0
    %v224 = vadd.f32 %v151, %v223
    %v225 = vpop.f32.mrf.mxu0
    %226 = vdwg.mxu0
    %v227 = vmax.f32 %v224, 0.0
    %v228 = vld [vmem:[%s5] sm:$0xff]
    %v229 = vld [vmem:[%s5 + $0x8] sm:$0xff]
    %v230 = vld [vmem:[%s5 + $0x10] sm:$0xff]
    %v231 = vld [vmem:[%s5 + $0x18] sm:$0xff]
    %v232 = vld [vmem:[%s5 + $0x20] sm:$0xff]
    %v233 = vld [vmem:[%s5 + $0x28] sm:$0xff]
    %v234 = vld [vmem:[%s5 + $0x30] sm:$0xff]
    %v235 = vld [vmem:[%s5 + $0x38] sm:$0xf]
    %v236 = vld [vmem:[#allocation4] sm:$0x1]
    %v238 = vlaneseq
    %v239 = vshrl.u32 %v238, 7
    %v240 = vsub.s32 0, %v239
    %v241 = vrot.slane %v236, %v240
    %vm243 = vcmask 490496
    %v245 = vsel %vm243, %v227, 0
    %vm247 = vcmask 1043456
    %v249 = vsel %vm247, %v235, 0
    %251 = vmatprep.subr.mxu0 0.0
    %252 = vmatpush1.msra.mxu0 0.0
    %253 = vmatprep.subr.mxu0 0.0
    %254 = vmatpush1.msra.mxu0 0.0
    %255 = vmatprep.subr.mxu0 0.0
    %256 = vmatpush1.msra.mxu0 0.0
    %257 = vmatprep.subr.mxu0 0.0
    %258 = vmatpush1.msra.mxu0 0.0
    %259 = vmatprep.subr.mxu0 0.0
    %260 = vmatpush1.msra.mxu0 0.0
    %261 = vmatprep.subr.mxu0 0.0
    %262 = vmatpush1.msra.mxu0 0.0
    %263 = vmatprep.subr.mxu0 0.0
    %264 = vmatpush1.msra.mxu0 0.0
    %265 = vmatprep.subr.mxu0 0.0
    %266 = vmatpush1.msra.mxu0 0.0
    %267 = vmatprep.subr.mxu0 0.0
    %268 = vmatpush1.msra.mxu0 %v249
    %269 = vmatprep.subr.mxu0 0.0
    %270 = vmatpush1.msra.mxu0 %v234
    %271 = vmatprep.subr.mxu0 0.0
    %272 = vmatpush1.msra.mxu0 %v233
    %273 = vmatprep.subr.mxu0 0.0
    %274 = vmatpush1.msra.mxu0 %v232
    %275 = vmatprep.subr.mxu0 0.0
    %276 = vmatpush1.msra.mxu0 %v231
    %277 = vmatprep.subr.mxu0 0.0
    %278 = vmatpush1.msra.mxu0 %v230
    %279 = vmatprep.subr.mxu0 0.0
    %280 = vmatpush1.msra.mxu0 %v229
    %281 = vmatprep.subr.mxu0 0.0
    %282 = vmatpush1.msra.mxu0 %v228
    %283 = vmatprep.subr.mxu0 0.0
    %284 = vmatpush2.msra.mxu0 0.0
    %285 = vmatprep.subr.mxu0 0.0
    %286 = vmatpush2.msra.mxu0 0.0
    %287 = vmatprep.subr.mxu0 0.0
    %288 = vmatpush2.msra.mxu0 0.0
    %289 = vmatprep.subr.mxu0 0.0
    %290 = vmatpush2.msra.mxu0 0.0
    %291 = vmatprep.subr.mxu0 0.0
    %292 = vmatpush2.msra.mxu0 0.0
    %293 = vmatprep.subr.mxu0 0.0
    %294 = vmatpush2.msra.mxu0 0.0
    %295 = vmatprep.subr.mxu0 0.0
    %296 = vmatpush2.msra.mxu0 0.0
    %297 = vmatprep.subr.mxu0 0.0
    %298 = vmatpush2.msra.mxu0 0.0
    %299 = vmatprep.subr.mxu0 0.0
    %300 = vmatpush2.msra.mxu0 0.0
    %301 = vmatprep.subr.mxu0 0.0
    %302 = vmatpush2.msra.mxu0 0.0
    %303 = vmatprep.subr.mxu0 0.0
    %304 = vmatpush2.msra.mxu0 0.0
    %305 = vmatprep.subr.mxu0 0.0
    %306 = vmatpush2.msra.mxu0 0.0
    %307 = vmatprep.subr.mxu0 0.0
    %308 = vmatpush2.msra.mxu0 0.0
    %309 = vmatprep.subr.mxu0 0.0
    %310 = vmatpush2.msra.mxu0 0.0
    %311 = vmatprep.subr.mxu0 0.0
    %312 = vmatpush2.msra.mxu0 0.0
    %313 = vmatprep.subr.mxu0 0.0
    %314 = vmatpush2.msra.mxu0 0.0
    %315 = vmatprep.mubr.f32.mxu0 0.0
    %316 = vmatmul.mubr.f32.gmra.mxu0 %v245
    %v317 = vpop.f32.mrf.mxu0
    %v318 = vadd.f32 %v241, %v317
    %v319 = vpop.f32.mrf.mxu0
    %320 = vdwg.mxu0
    %vm321 = vcmask 23552
    %322 = vst.msk [vmem:[%s7] sm:$0xff] %vm321, %v318
    // Predicated region
    $region38: #{neuralnet_forward.1} parent=1 // pred_check
      _
    $region39: #{neuralnet_forward.1} parent=1 // pred_check_branch
      %324 = sbr.rel (0) target = $region41
    $region40: #{neuralnet_forward.1} parent=1 // pred_region
      _
    $region41: #{neuralnet_forward.1} parent=1 // pred_fallthru
      _
    // Predicated region
    $region42: #{neuralnet_forward.1} parent=1 // pred_check
      _
    $region43: #{neuralnet_forward.1} parent=1 // pred_check_branch
      %326 = sbr.rel (0) target = $region45
    $region44: #{neuralnet_forward.1} parent=1 // pred_region
      _
    $region45: #{neuralnet_forward.1} parent=1 // pred_fallthru
      _
    %327 = vsyncpa [#allocation3], 1
    %328 = vsyncpa [#allocation5], 1

</llo_original>
